<compile_context>
chip_gen: v7x
topology: tpu7x:2x2x1
jax: 0.10.0
libtpu: 0.0.40
codegen_flags: <defaults>
</compile_context>

<pallas_src>
import jax
import jax.numpy as jnp
from jax import lax
from jax.experimental import pallas as pl
from jax.experimental.pallas import tpu as pltpu

_LANE = 128


def _round_up(x, m):
    return ((x + m - 1) // m) * m


def _make_l1_kernel(*, tile_rows, chunk_rows, acc_rows, tiles_per_core,
                    valid_rows, needs_mask):
    """Per-grid-step body: accumulate sum(|a - b|) over one (tile_rows, 128) tile."""
    n_chunks = tile_rows // chunk_rows

    def kernel(a_ref, b_ref, out_ref):
        p = pl.program_id(0)          # core-split axis ("parallel")
        t = pl.program_id(1)          # reduction axis ("arbitrary", last)

        @pl.when(t == 0)
        def _():
            out_ref[...] = jnp.zeros_like(out_ref)

        tile_row0 = (p * tiles_per_core + t) * tile_rows

        def chunk_body(ci, acc):
            r0 = ci * chunk_rows
            if not isinstance(r0, int):
                r0 = pl.multiple_of(r0, chunk_rows)
            a = a_ref[pl.ds(r0, chunk_rows), :].astype(jnp.float32)
            b = b_ref[pl.ds(r0, chunk_rows), :].astype(jnp.float32)
            d = jnp.abs(a - b)
            if needs_mask:
                row_ids = tile_row0 + r0 + lax.broadcasted_iota(
                    jnp.int32, (chunk_rows, 1), 0)
                d = jnp.where(row_ids < valid_rows, d, 0.0)
            # Collapse only the chunk-group axis; keep the lane-dense
            # (acc_rows, 128) shape (pure VALU adds, no cross-lane work).
            return acc + jnp.sum(d.reshape(-1, acc_rows, _LANE), axis=0)

        init = jnp.zeros((acc_rows, _LANE), jnp.float32)
        if n_chunks <= 4:
            acc = init
            for ci in range(n_chunks):        # static unroll for short loops
                acc = chunk_body(ci, acc)
        else:
            acc = lax.fori_loop(0, n_chunks, chunk_body, init)
        out_ref[...] += acc

    return kernel


def cycle_consistency_loss(real_images, generated_images, lambda_x,
                           *, target_block_bytes=4 * 1024 * 1024):
    """Exact forward of CycleConsistencyLoss for arbitrary-shaped inputs."""
    assert real_images.shape == generated_images.shape
    ne = real_images.size
    if ne == 0:
        # torch.mean over an empty tensor is NaN.
        return jnp.array(jnp.nan, dtype=jnp.float32)

    a = real_images.reshape(-1)
    b = generated_images.reshape(-1)

    itemsize = jnp.dtype(a.dtype).itemsize
    sub = max(8, 32 // itemsize)          # packed-sublane rounding per dtype

    if ne % _LANE != 0:
        # Rare ragged case (numel not a multiple of 128): pad the flat view up
        # to the next lane multiple so the (rows, 128) reshape is possible.
        # Padding contributes |0-0| = 0; the mean divides by the true count.
        # TODO(synk): a manual-DMA 1-D path could avoid even this small copy.
        pad = _round_up(ne, _LANE) - ne
        a = jnp.pad(a, (0, pad))
        b = jnp.pad(b, (0, pad))

    rows = a.shape[0] // _LANE            # number of valid 128-lane rows
    a2 = a.reshape(rows, _LANE)           # zero-copy reshape (contiguous)
    b2 = b.reshape(rows, _LANE)

    # --- tiling -------------------------------------------------------------
    tile_rows_target = max(sub, (target_block_bytes // (_LANE * itemsize)) // sub * sub)
    if rows <= tile_rows_target:
        tile_rows = rows                  # single full-extent block (always legal)
        n_tiles = 1
    else:
        tile_rows = tile_rows_target      # multiple of `sub`; last block partial
        n_tiles = pl.cdiv(rows, tile_rows)

    # Always split tiles across both TensorCores when there is more than one
    # tile (v7x megacore); overhanging grid cells are clamped + masked.
    ncores = 2 if n_tiles >= 2 else 1
    tiles_per_core = pl.cdiv(n_tiles, ncores)

    # Resident per-core accumulator rows (lane-dense, multiple of 8).
    acc_rows = next((g for g in (64, 32, 16, 8) if tile_rows % g == 0), tile_rows)
    groups = tile_rows // acc_rows
    groups_per_chunk = max(1, min(512 // acc_rows, groups))
    while groups % groups_per_chunk != 0:
        groups_per_chunk -= 1
    chunk_rows = acc_rows * groups_per_chunk

    needs_mask = (rows != n_tiles * tile_rows) or (n_tiles != ncores * tiles_per_core)

    kernel = _make_l1_kernel(tile_rows=tile_rows, chunk_rows=chunk_rows,
                             acc_rows=acc_rows, tiles_per_core=tiles_per_core,
                             valid_rows=rows, needs_mask=needs_mask)

    if n_tiles == ncores * tiles_per_core:
        in_map = lambda p, t: (p * tiles_per_core + t, 0)
    else:
        last_tile = n_tiles - 1
        in_map = lambda p, t: (jnp.minimum(p * tiles_per_core + t, last_tile), 0)

    partials = pl.pallas_call(
        kernel,
        out_shape=jax.ShapeDtypeStruct((ncores * acc_rows, _LANE), jnp.float32),
        grid_spec=pltpu.PrefetchScalarGridSpec(
            num_scalar_prefetch=0,
            grid=(ncores, tiles_per_core),
            in_specs=[
                pl.BlockSpec((tile_rows, _LANE), in_map),
                pl.BlockSpec((tile_rows, _LANE), in_map),
            ],
            out_specs=pl.BlockSpec((acc_rows, _LANE), lambda p, t: (p, 0)),
        ),
        compiler_params=pltpu.CompilerParams(
            dimension_semantics=("parallel", "arbitrary"),
            vmem_limit_bytes=48 * 1024 * 1024,
        ),
    )(a2, b2)

    # Tiny final cross-lane reduce + scale in JAX glue; divide by true count.
    return (lambda_x / ne) * jnp.sum(partials)


def _reference(real_images, generated_images, lambda_x):
    return lambda_x * jnp.mean(jnp.abs(real_images - generated_images))


if __name__ == "__main__":
    key = jax.random.PRNGKey(0)
    k1, k2, k3, k4 = jax.random.split(key, 4)
    lambda_x = 10.0

    # Case 1: typical image batch, lane-aligned -> zero-copy single-tile path.
    real = jax.random.normal(k1, (2, 4, 16, 16), dtype=jnp.float32)
    gen = jax.random.normal(k2, (2, 4, 16, 16), dtype=jnp.float32)
    loss = jax.block_until_ready(cycle_consistency_loss(real, gen, lambda_x))
    ref = _reference(real, gen, lambda_x)
    assert jnp.allclose(loss, ref, atol=1e-5, rtol=1e-5), (loss, ref)

    # Case 2: odd ragged tile count (forced tiny blocks) -> exercises the
    # two-core split, clamped index_map and in-kernel masking of the partial
    # last tile — no data padding/copies.
    real2 = jax.random.normal(k3, (2, 4, 16, 20), dtype=jnp.float32)
    gen2 = jax.random.normal(k4, (2, 4, 16, 20), dtype=jnp.float32)
    loss2 = jax.block_until_ready(
        cycle_consistency_loss(real2, gen2, lambda_x, target_block_bytes=4096))
    ref2 = _reference(real2, gen2, lambda_x)
    assert jnp.allclose(loss2, ref2, atol=1e-5, rtol=1e-5), (loss2, ref2)

    print("KERNEL_OK")
</pallas_src>

<mosaic_0001>
module attributes {stable_mosaic.version = 11 : i64} {
  func.func @kernel(%arg0: i32, %arg1: i32, %arg2: memref<16x128xf32, #tpu.memory_space<vmem>>, %arg3: memref<16x128xf32, #tpu.memory_space<vmem>>, %arg4: memref<16x128xf32, #tpu.memory_space<vmem>>) attributes {dimension_semantics = [#tpu.dimension_semantics<parallel>, #tpu.dimension_semantics<arbitrary>], iteration_bounds = array<i64: 1, 1>, scalar_prefetch = 0 : i64, scratch_operands = 0 : i64, tpu.core_type = #tpu.core_type<tc>, window_params = [{transform_indices = @transform_0, window_bounds = array<i64: 16, 128>}, {transform_indices = @transform_1, window_bounds = array<i64: 16, 128>}, {transform_indices = @transform_2, window_bounds = array<i64: 16, 128>}]} {
    %c0_i32 = arith.constant 0 : i32
    %0 = arith.cmpi eq, %arg1, %c0_i32 : i32
    %1 = arith.extui %0 : i1 to i32
    %c0_i32_0 = arith.constant 0 : i32
    %2 = arith.cmpi ne, %1, %c0_i32_0 : i32
    scf.if %2 {
      %cst_9 = arith.constant 0.000000e+00 : f32
      %14 = vector.broadcast %cst_9 : f32 to vector<16x128xf32>
      %c0_10 = arith.constant 0 : index
      %c0_11 = arith.constant 0 : index
      %15 = vector.load %arg4[%c0_10, %c0_11] : memref<16x128xf32, #tpu.memory_space<vmem>>, vector<16x128xf32>
      tpu.vector_store %arg4[%c0_10, %c0_11], %14 {strides = array<i32>} : memref<16x128xf32, #tpu.memory_space<vmem>>, vector<16x128xf32>,
    } else {
    }
    %cst = arith.constant 0.000000e+00 : f32
    %3 = vector.broadcast %cst : f32 to vector<16x128xf32>
    %c0 = arith.constant 0 : index
    %c0_1 = arith.constant 0 : index
    %4 = vector.load %arg2[%c0, %c0_1] : memref<16x128xf32, #tpu.memory_space<vmem>>, vector<16x128xf32>
    %c0_2 = arith.constant 0 : index
    %c0_3 = arith.constant 0 : index
    %5 = vector.load %arg3[%c0_2, %c0_3] : memref<16x128xf32, #tpu.memory_space<vmem>>, vector<16x128xf32>
    %6 = arith.subf %4, %5 : vector<16x128xf32>
    %7 = math.absf %6 : vector<16x128xf32>
    %8 = vector.shape_cast %7 : vector<16x128xf32> to vector<1x16x128xf32>
    %cst_4 = arith.constant dense<0.000000e+00> : vector<16x128xf32>
    %9 = vector.multi_reduction <add>, %8, %cst_4 [0] : vector<1x16x128xf32> to vector<16x128xf32>
    %10 = arith.addf %3, %9 : vector<16x128xf32>
    %c0_5 = arith.constant 0 : index
    %c0_6 = arith.constant 0 : index
    %11 = vector.load %arg4[%c0_5, %c0_6] : memref<16x128xf32, #tpu.memory_space<vmem>>, vector<16x128xf32>
    %12 = arith.addf %11, %10 : vector<16x128xf32>
    %c0_7 = arith.constant 0 : index
    %c0_8 = arith.constant 0 : index
    %13 = vector.load %arg4[%c0_7, %c0_8] : memref<16x128xf32, #tpu.memory_space<vmem>>, vector<16x128xf32>
    tpu.vector_store %arg4[%c0_7, %c0_8], %12 {strides = array<i32>} : memref<16x128xf32, #tpu.memory_space<vmem>>, vector<16x128xf32>,
    return
  }
  func.func @transform_0(%arg0: i32, %arg1: i32) -> (i32, i32) {
    %c1_i32 = arith.constant 1 : i32
    %0 = arith.muli %arg0, %c1_i32 : i32
    %1 = arith.addi %0, %arg1 : i32
    %c0_i32 = arith.constant 0 : i32
    %c0_i32_0 = arith.constant 0 : i32
    return %1, %c0_i32 : i32, i32
  }
  func.func @transform_1(%arg0: i32, %arg1: i32) -> (i32, i32) {
    %c1_i32 = arith.constant 1 : i32
    %0 = arith.muli %arg0, %c1_i32 : i32
    %1 = arith.addi %0, %arg1 : i32
    %c0_i32 = arith.constant 0 : i32
    %c0_i32_0 = arith.constant 0 : i32
    return %1, %c0_i32 : i32, i32
  }
  func.func @transform_2(%arg0: i32, %arg1: i32) -> (i32, i32) {
    %c0_i32 = arith.constant 0 : i32
    %c0_i32_0 = arith.constant 0 : i32
    return %arg0, %c0_i32 : i32, i32
  }
}

</mosaic_0001>

<llo_original>
// kernel: tpu_custom_call.1
$region0: #{tpu_custom_call.1}
  #allocation0 [shape = 'u32[]', space=smem, size = 0x4, offset = 0x4, fixed_abs, tag = 'smem constant byte address 0x4 - core index']
  #allocation1 [shape = 'u32[144,128]{1,0:T(1,128)}', space=vmem, size = 0x12000, scoped, tag = 'internal scratch']
  %s0 = inlined_call_operand.hbm [shape: f32[16,128], index: 0, kind: input, shape index: {}]
  %s1 = inlined_call_operand.hbm [shape: f32[16,128], index: 1, kind: input, shape index: {}]
  %s2 = inlined_call_operand.hbm [shape: f32[16,128], index: 2, kind: output, shape index: {}]
  %s3 = sld [smem:[#allocation0]]
  $region30: #{tpu_custom_call.1} parent=0
    _
  %s5 = ssub.s32 1, %s3
  %s6 = scalar_select 0, %s5, %s3
  $region1: #{tpu_custom_call.1} parent=0
    #allocation2 [shape = 'u8[8192]{0}', space=vmem, size = 0x2000, scoped, tag = 'input window, operand 0, single buffered']
    #allocation3 [shape = 's32[1]{0}', space=sflag, size = 0x4, scoped, tag = 'scoped memory for tpu_custom_call.1']
    #allocation4 [shape = 's32[1]{0}', space=sflag, size = 0x4, scoped, tag = 'scoped memory for tpu_custom_call.1']
    #allocation5 [shape = 'u8[8192]{0}', space=vmem, size = 0x2000, scoped, tag = 'input window, operand 1, single buffered']
    #allocation6 [shape = 's32[1]{0}', space=sflag, size = 0x4, scoped, tag = 'scoped memory for tpu_custom_call.1']
    #allocation7 [shape = 'u8[8192]{0}', space=vmem, size = 0x2000, scoped, tag = 'output window, operand 0, single buffered']
    %7 = vsyncpa [#allocation3], 0
    %8 = vsyncpa [#allocation6], 0
    %9 = vsyncpa [#allocation4], 0
    // Predicated region
    $region2: #{tpu_custom_call.1} parent=1 // pred_check
      _
    $region3: #{tpu_custom_call.1} parent=1 // pred_check_branch
      %11 = sbr.rel (0) target = $region5
    $region4: #{tpu_custom_call.1} parent=1 // pred_region
      %s12 = sadd.s32 0, 0
      %s13 = smul.u32 2, %s12
      %s15 = ssub.s32 256, 256
      %16 = vsyncadd [#allocation3], %s15
      %s17 = smul.addr %s13, 128
      %s18 = scalar_lea.hbm %s0, %s17
      %s19 = sshll.u32 [#allocation2], 4
      %s20 = int_to_ptr.vmem [resolvable:$true] %s19
      %25 = dma.hbm_to_vmem [thread:$0]  %s18, 256, %s20, [#allocation3], 128, 128, 8
    $region5: #{tpu_custom_call.1} parent=1 // pred_fallthru
      _
    // Predicated region
    $region6: #{tpu_custom_call.1} parent=1 // pred_check
      _
    $region7: #{tpu_custom_call.1} parent=1 // pred_check_branch
      %27 = sbr.rel (0) target = $region9
    $region8: #{tpu_custom_call.1} parent=1 // pred_region
      %s28 = sadd.s32 0, 0
      %s29 = smul.u32 2, %s28
      %s31 = ssub.s32 256, 256
      %32 = vsyncadd [#allocation6], %s31
      %s33 = smul.addr %s29, 128
      %s34 = scalar_lea.hbm %s1, %s33
      %s35 = sshll.u32 [#allocation5], 4
      %s36 = int_to_ptr.vmem [resolvable:$true] %s35
      %41 = dma.hbm_to_vmem [thread:$0]  %s34, 256, %s36, [#allocation6], 128, 128, 8
    $region9: #{tpu_custom_call.1} parent=1 // pred_fallthru
      _
    // Predicated region
    $region10: #{tpu_custom_call.1} parent=1 // pred_check
      _
    $region11: #{tpu_custom_call.1} parent=1 // pred_check_branch
      %43 = sbr.rel (0) target = $region13
    $region12: #{tpu_custom_call.1} parent=1 // pred_region
      %44 = dma.done [#allocation3], 256
    $region13: #{tpu_custom_call.1} parent=1 // pred_fallthru
      _
    // Predicated region
    $region14: #{tpu_custom_call.1} parent=1 // pred_check
      _
    $region15: #{tpu_custom_call.1} parent=1 // pred_check_branch
      %46 = sbr.rel (0) target = $region17
    $region16: #{tpu_custom_call.1} parent=1 // pred_region
      %47 = dma.done [#allocation6], 256
    $region17: #{tpu_custom_call.1} parent=1 // pred_fallthru
      _
    %s48 = sadd.s32 0, 0
    %s49 = smul.u32 2, %s48
    %s50 = sadd.s32 0, 0
    %s51 = smul.u32 2, %s50
    %p52 = scmp.eq.s32.totalorder 0, 0
    // Predicated region
    $region18: #{tpu_custom_call.1} parent=1 // pred_check
      %p53 = pneg %p52
    $region19: #{tpu_custom_call.1} parent=1 // pred_check_branch
      %55 = sbr.rel (%p53) target = $region21
    $region20: #{tpu_custom_call.1} parent=1 // pred_region
      %56 = vst [vmem:[#allocation7] sm:$0xff] 0.0
      %57 = vst [vmem:[#allocation7 + $0x8] sm:$0xff] 0.0
    $region21: #{tpu_custom_call.1} parent=1 // pred_fallthru
      _
    %v58 = vld [vmem:[#allocation2] sm:$0xff]
    %v59 = vld [vmem:[#allocation2 + $0x8] sm:$0xff]
    %v60 = vld [vmem:[#allocation5] sm:$0xff]
    %v61 = vld [vmem:[#allocation5 + $0x8] sm:$0xff]
    %v62 = vsub.f32 %v58, %v60
    %v63 = vsub.f32 %v59, %v61
    %v64 = vand.u32 2147483647, %v62
    %v65 = vand.u32 2147483647, %v63
    %v66 = vadd.f32 %v64, 0.0
    %v67 = vadd.f32 %v65, 0.0
    %v68 = vadd.f32 %v66, 0.0
    %v69 = vadd.f32 %v67, 0.0
    %v70 = vld [vmem:[#allocation7] sm:$0xff]
    %v71 = vld [vmem:[#allocation7 + $0x8] sm:$0xff]
    %v72 = vadd.f32 %v70, %v68
    %v73 = vadd.f32 %v71, %v69
    %74 = vst [vmem:[#allocation7] sm:$0xff] %v72
    %75 = vst [vmem:[#allocation7 + $0x8] sm:$0xff] %v73
    // Predicated region
    $region22: #{tpu_custom_call.1} parent=1 // pred_check
      _
    $region23: #{tpu_custom_call.1} parent=1 // pred_check_branch
      %77 = sbr.rel (0) target = $region25
    $region24: #{tpu_custom_call.1} parent=1 // pred_region
      %s79 = ssub.s32 256, 256
      %80 = vsyncadd [#allocation4], %s79
      %s81 = sshll.u32 [#allocation7], 4
      %s82 = int_to_ptr.vmem [resolvable:$true] %s81
      %87 = dma.vmem_to_hbm [thread:$0]  %s82, 256, %s2, [#allocation4], 128, 128, 8
    $region25: #{tpu_custom_call.1} parent=1 // pred_fallthru
      _
    // Predicated region
    $region26: #{tpu_custom_call.1} parent=1 // pred_check
      _
    $region27: #{tpu_custom_call.1} parent=1 // pred_check_branch
      %89 = sbr.rel (0) target = $region29
    $region28: #{tpu_custom_call.1} parent=1 // pred_region
      %90 = dma.done [#allocation4], 256
    $region29: #{tpu_custom_call.1} parent=1 // pred_fallthru
      _
    %91 = vsyncpa [#allocation3], 1
    %92 = vsyncpa [#allocation6], 1
    %93 = vsyncpa [#allocation4], 1

</llo_original>
